<compile_context>
chip_gen: v5e
topology: v5e:2x2
jax: 0.10.0
libtpu: 0.0.40
codegen_flags: <defaults>
</compile_context>

<pallas_src>
import jax
import jax.numpy as jnp
from jax.experimental import pallas as pl
from jax.experimental.pallas import tpu as pltpu


def _round_up(n, m):
    return ((n + m - 1) // m) * m


def _mlp_kernel(x_ref, w1_ref, w2_ref, w3_ref, b_ref, o_ref):
    """One batch tile: fused 3x (matmul + bias) with ReLU between layers."""
    hid_p = w1_ref.shape[1]
    out_p = w3_ref.shape[1]
    cdt = x_ref.dtype  # compute (MXU operand) dtype, e.g. bfloat16

    b = b_ref[...]                    # (3, W) float32, VMEM-resident
    b1 = b[0:1, :hid_p]
    b2 = b[1:2, :hid_p]
    b3 = b[2:3, :out_p]

    x = x_ref[...]                                                     # (TB, IN_P) bf16
    h1 = jnp.dot(x, w1_ref[...], preferred_element_type=jnp.float32) + b1
    h1 = jnp.maximum(h1, 0.0).astype(cdt)                              # (TB, HID_P)
    h2 = jnp.dot(h1, w2_ref[...], preferred_element_type=jnp.float32) + b2
    h2 = jnp.maximum(h2, 0.0).astype(cdt)                              # (TB, HID_P)
    out = jnp.dot(h2, w3_ref[...], preferred_element_type=jnp.float32) + b3
    o_ref[...] = out.astype(o_ref.dtype)                               # (TB, OUT_P) dense store


def two_layer_forward(x, params, *, block_batch=512, compute_dtype=jnp.bfloat16):
    """Fused forward pass of TwoLayerArchitecture.

    x: (B, input_size) float32
    params: dict with w1 (in,hid), b1 (1,hid), w2 (hid,hid), b2 (1,hid),
            w3 (hid,out), b3 (1,out)
    """
    w1, b1 = params["w1"], params["b1"]
    w2, b2 = params["w2"], params["b2"]
    w3, b3 = params["w3"], params["b3"]

    B, in_size = x.shape
    hid = w1.shape[1]
    out_size = w3.shape[1]

    # Pad feature dims to lane-dense multiples of 128 (exact: zero rows/cols contribute 0).
    IN_P = _round_up(in_size, 128)
    HID_P = _round_up(hid, 128)
    OUT_P = _round_up(out_size, 128)
    W = max(HID_P, OUT_P)

    # Batch tile: multiple of 8 sublanes; grid over batch for pipelining / megacore.
    TB = min(_round_up(B, 8), _round_up(block_batch, 8))
    B_P = _round_up(B, TB)
    grid = (B_P // TB,)

    # NOTE: in production, pad/cast the weights once outside the hot path.
    x_p = jnp.zeros((B_P, IN_P), compute_dtype).at[:B, :in_size].set(x.astype(compute_dtype))
    w1_p = jnp.zeros((IN_P, HID_P), compute_dtype).at[:in_size, :hid].set(w1.astype(compute_dtype))
    w2_p = jnp.zeros((HID_P, HID_P), compute_dtype).at[:hid, :hid].set(w2.astype(compute_dtype))
    w3_p = jnp.zeros((HID_P, OUT_P), compute_dtype).at[:hid, :out_size].set(w3.astype(compute_dtype))

    biases = jnp.zeros((3, W), jnp.float32)
    biases = biases.at[0, :hid].set(b1.reshape(-1).astype(jnp.float32))
    biases = biases.at[1, :hid].set(b2.reshape(-1).astype(jnp.float32))
    biases = biases.at[2, :out_size].set(b3.reshape(-1).astype(jnp.float32))

    out_p = pl.pallas_call(
        _mlp_kernel,
        out_shape=jax.ShapeDtypeStruct((B_P, OUT_P), jnp.float32),
        grid=grid,
        in_specs=[
            pl.BlockSpec((TB, IN_P), lambda i: (i, 0)),        # x: tiled over batch
            pl.BlockSpec((IN_P, HID_P), lambda i: (0, 0)),     # weights: VMEM-resident
            pl.BlockSpec((HID_P, HID_P), lambda i: (0, 0)),
            pl.BlockSpec((HID_P, OUT_P), lambda i: (0, 0)),
            pl.BlockSpec((3, W), lambda i: (0, 0)),            # packed biases: one DMA
        ],
        out_specs=pl.BlockSpec((TB, OUT_P), lambda i: (i, 0)), # lane-dense output tile
        compiler_params=pltpu.CompilerParams(
            dimension_semantics=("parallel",),                 # shard batch across v7x TCs
        ),
    )(x_p, w1_p, w2_p, w3_p, biases)

    return out_p[:B, :out_size]


def init_params(key, input_size, hidden_size, output_size):
    """Deterministic init matching nn.Linear's U(-1/sqrt(fan_in), 1/sqrt(fan_in))."""
    ks = jax.random.split(key, 6)

    def linear(kw, kb, fan_in, fan_out):
        bound = 1.0 / jnp.sqrt(fan_in)
        w = jax.random.uniform(kw, (fan_in, fan_out), jnp.float32, -bound, bound)
        b = jax.random.uniform(kb, (1, fan_out), jnp.float32, -bound, bound)
        return w, b

    w1, b1 = linear(ks[0], ks[1], input_size, hidden_size)
    w2, b2 = linear(ks[2], ks[3], hidden_size, hidden_size)
    w3, b3 = linear(ks[4], ks[5], hidden_size, output_size)
    return {"w1": w1, "b1": b1, "w2": w2, "b2": b2, "w3": w3, "b3": b3}


def _reference_forward(x, params, compute_dtype=jnp.bfloat16):
    """Plain-JAX reference using the same bf16-operand / f32-accumulate math path."""
    cdt = compute_dtype
    xc = x.astype(cdt)
    h1 = jnp.dot(xc, params["w1"].astype(cdt), preferred_element_type=jnp.float32) + params["b1"]
    h1 = jnp.maximum(h1, 0.0).astype(cdt)
    h2 = jnp.dot(h1, params["w2"].astype(cdt), preferred_element_type=jnp.float32) + params["b2"]
    h2 = jnp.maximum(h2, 0.0).astype(cdt)
    out = jnp.dot(h2, params["w3"].astype(cdt), preferred_element_type=jnp.float32) + params["b3"]
    return out


if __name__ == "__main__":
    input_size, hidden_size, output_size = 16, 32, 4
    batch = 20  # not a multiple of the 8-row batch tile -> exercises padding + slicing

    key = jax.random.PRNGKey(0)
    kx, kp = jax.random.split(key)
    x = jax.random.normal(kx, (batch, input_size), jnp.float32)
    params = init_params(kp, input_size, hidden_size, output_size)

    # Small block_batch so the demo exercises a multi-step batch grid (grid = 3).
    out = two_layer_forward(x, params, block_batch=8)
    out = jax.block_until_ready(out)

    ref = _reference_forward(x, params)
    assert out.shape == (batch, output_size)
    assert jnp.allclose(out, ref, atol=1e-4, rtol=1e-4), (
        f"max abs diff {jnp.max(jnp.abs(out - ref))}"
    )

    print("KERNEL_OK")
</pallas_src>

<mosaic_0001>
module attributes {stable_mosaic.version = 11 : i64} {
  func.func @_mlp_kernel(%arg0: i32, %arg1: memref<8x128xbf16, #tpu.memory_space<vmem>>, %arg2: memref<128x128xbf16, #tpu.memory_space<vmem>>, %arg3: memref<128x128xbf16, #tpu.memory_space<vmem>>, %arg4: memref<128x128xbf16, #tpu.memory_space<vmem>>, %arg5: memref<3x128xf32, #tpu.memory_space<vmem>>, %arg6: memref<8x128xf32, #tpu.memory_space<vmem>>) attributes {dimension_semantics = [#tpu.dimension_semantics<parallel>], iteration_bounds = array<i64: 3>, scalar_prefetch = 0 : i64, scratch_operands = 0 : i64, tpu.core_type = #tpu.core_type<tc>, window_params = [{transform_indices = @transform_0, window_bounds = array<i64: 8, 128>}, {pipeline_mode = #tpu.pipeline_mode<synchronous>, transform_indices = @transform_1, window_bounds = array<i64: 128, 128>}, {pipeline_mode = #tpu.pipeline_mode<synchronous>, transform_indices = @transform_2, window_bounds = array<i64: 128, 128>}, {pipeline_mode = #tpu.pipeline_mode<synchronous>, transform_indices = @transform_3, window_bounds = array<i64: 128, 128>}, {pipeline_mode = #tpu.pipeline_mode<synchronous>, transform_indices = @transform_4, window_bounds = array<i64: 3, 128>}, {transform_indices = @transform_5, window_bounds = array<i64: 8, 128>}]} {
    %c0 = arith.constant 0 : index
    %c0_0 = arith.constant 0 : index
    %0 = vector.load %arg5[%c0, %c0_0] : memref<3x128xf32, #tpu.memory_space<vmem>>, vector<3x128xf32>
    %1 = vector.extract_strided_slice %0 {offsets = [0, 0], sizes = [1, 128], strides = [1, 1]} : vector<3x128xf32> to vector<1x128xf32>
    %2 = vector.extract_strided_slice %0 {offsets = [1, 0], sizes = [1, 128], strides = [1, 1]} : vector<3x128xf32> to vector<1x128xf32>
    %3 = vector.extract_strided_slice %0 {offsets = [2, 0], sizes = [1, 128], strides = [1, 1]} : vector<3x128xf32> to vector<1x128xf32>
    %c0_1 = arith.constant 0 : index
    %c0_2 = arith.constant 0 : index
    %4 = vector.load %arg1[%c0_1, %c0_2] : memref<8x128xbf16, #tpu.memory_space<vmem>>, vector<8x128xbf16>
    %c0_3 = arith.constant 0 : index
    %c0_4 = arith.constant 0 : index
    %5 = vector.load %arg2[%c0_3, %c0_4] : memref<128x128xbf16, #tpu.memory_space<vmem>>, vector<128x128xbf16>
    %cst = arith.constant dense<0.000000e+00> : vector<8x128xf32>
    %6 = tpu.matmul %4, %5, %cst {dimension_numbers = #tpu.dot_dimension_numbers<[1], [0], [0], [1], [0, 0, 1, 1], [], []>} : vector<8x128xbf16>, vector<128x128xbf16>, vector<8x128xf32> -> vector<8x128xf32>
    %7 = vector.broadcast %1 : vector<1x128xf32> to vector<8x128xf32>
    %8 = arith.addf %6, %7 : vector<8x128xf32>
    %cst_5 = arith.constant 0.000000e+00 : f32
    %9 = vector.broadcast %cst_5 : f32 to vector<8x128xf32>
    %10 = arith.maximumf %8, %9 : vector<8x128xf32>
    %11 = arith.truncf %10 : vector<8x128xf32> to vector<8x128xbf16>
    %c0_6 = arith.constant 0 : index
    %c0_7 = arith.constant 0 : index
    %12 = vector.load %arg3[%c0_6, %c0_7] : memref<128x128xbf16, #tpu.memory_space<vmem>>, vector<128x128xbf16>
    %cst_8 = arith.constant dense<0.000000e+00> : vector<8x128xf32>
    %13 = tpu.matmul %11, %12, %cst_8 {dimension_numbers = #tpu.dot_dimension_numbers<[1], [0], [0], [1], [0, 0, 1, 1], [], []>} : vector<8x128xbf16>, vector<128x128xbf16>, vector<8x128xf32> -> vector<8x128xf32>
    %14 = vector.broadcast %2 : vector<1x128xf32> to vector<8x128xf32>
    %15 = arith.addf %13, %14 : vector<8x128xf32>
    %cst_9 = arith.constant 0.000000e+00 : f32
    %16 = vector.broadcast %cst_9 : f32 to vector<8x128xf32>
    %17 = arith.maximumf %15, %16 : vector<8x128xf32>
    %18 = arith.truncf %17 : vector<8x128xf32> to vector<8x128xbf16>
    %c0_10 = arith.constant 0 : index
    %c0_11 = arith.constant 0 : index
    %19 = vector.load %arg4[%c0_10, %c0_11] : memref<128x128xbf16, #tpu.memory_space<vmem>>, vector<128x128xbf16>
    %cst_12 = arith.constant dense<0.000000e+00> : vector<8x128xf32>
    %20 = tpu.matmul %18, %19, %cst_12 {dimension_numbers = #tpu.dot_dimension_numbers<[1], [0], [0], [1], [0, 0, 1, 1], [], []>} : vector<8x128xbf16>, vector<128x128xbf16>, vector<8x128xf32> -> vector<8x128xf32>
    %21 = vector.broadcast %3 : vector<1x128xf32> to vector<8x128xf32>
    %22 = arith.addf %20, %21 : vector<8x128xf32>
    %c0_13 = arith.constant 0 : index
    %c0_14 = arith.constant 0 : index
    %23 = vector.load %arg6[%c0_13, %c0_14] : memref<8x128xf32, #tpu.memory_space<vmem>>, vector<8x128xf32>
    tpu.vector_store %arg6[%c0_13, %c0_14], %22 {strides = array<i32>} : memref<8x128xf32, #tpu.memory_space<vmem>>, vector<8x128xf32>,
    return
  }
  func.func @transform_0(%arg0: i32) -> (i32, i32) {
    %c0_i32 = arith.constant 0 : i32
    %c0_i32_0 = arith.constant 0 : i32
    return %arg0, %c0_i32 : i32, i32
  }
  func.func @transform_1(%arg0: i32) -> (i32, i32) {
    %c0_i32 = arith.constant 0 : i32
    %c0_i32_0 = arith.constant 0 : i32
    %c0_i32_1 = arith.constant 0 : i32
    return %c0_i32, %c0_i32_0 : i32, i32
  }
  func.func @transform_2(%arg0: i32) -> (i32, i32) {
    %c0_i32 = arith.constant 0 : i32
    %c0_i32_0 = arith.constant 0 : i32
    %c0_i32_1 = arith.constant 0 : i32
    return %c0_i32, %c0_i32_0 : i32, i32
  }
  func.func @transform_3(%arg0: i32) -> (i32, i32) {
    %c0_i32 = arith.constant 0 : i32
    %c0_i32_0 = arith.constant 0 : i32
    %c0_i32_1 = arith.constant 0 : i32
    return %c0_i32, %c0_i32_0 : i32, i32
  }
  func.func @transform_4(%arg0: i32) -> (i32, i32) {
    %c0_i32 = arith.constant 0 : i32
    %c0_i32_0 = arith.constant 0 : i32
    %c0_i32_1 = arith.constant 0 : i32
    return %c0_i32, %c0_i32_0 : i32, i32
  }
  func.func @transform_5(%arg0: i32) -> (i32, i32) {
    %c0_i32 = arith.constant 0 : i32
    %c0_i32_0 = arith.constant 0 : i32
    return %arg0, %c0_i32 : i32, i32
  }
}

</mosaic_0001>

<llo_original>
// kernel: tpu_custom_call.1
$region0: #{tpu_custom_call.1}
  #allocation0 [shape = 'u32[]', space=smem, size = 0x4, offset = 0x4, fixed_abs, tag = 'smem constant byte address 0x4 - core index']
  #allocation1 [shape = 'u32[72,128]{1,0:T(1,128)}', space=vmem, size = 0x9000, scoped, tag = 'internal scratch']
  %s0 = inlined_call_operand.hbm [shape: bf16[24,128], index: 0, kind: input, shape index: {}]
  %s1 = inlined_call_operand.hbm [shape: bf16[128,128], index: 1, kind: input, shape index: {}]
  %s2 = inlined_call_operand.hbm [shape: bf16[128,128], index: 2, kind: input, shape index: {}]
  %s3 = inlined_call_operand.hbm [shape: bf16[128,128], index: 3, kind: input, shape index: {}]
  %s4 = inlined_call_operand.hbm [shape: f32[3,128], index: 4, kind: input, shape index: {}]
  %s5 = inlined_call_operand.hbm [shape: f32[24,128], index: 5, kind: output, shape index: {}]
  %s6 = sld [smem:[#allocation0]]
  $region73: #{tpu_custom_call.1} parent=0
    _
  %s8 = ssub.s32 1, %s6
  %s9 = scalar_select 0, %s8, %s6
  $region1: #{tpu_custom_call.1} parent=0
    #allocation2 [shape = 'u8[4096]{0}', space=vmem, size = 0x1000, scoped, tag = 'input window, operand 0']
    #allocation3 [shape = 's32[2]{0}', space=sflag, size = 0x8, scoped, tag = 'scoped memory for tpu_custom_call.1']
    #allocation4 [shape = 's32[2]{0}', space=sflag, size = 0x8, scoped, tag = 'scoped memory for tpu_custom_call.1']
    #allocation5 [shape = 'u8[32768]{0}', space=vmem, size = 0x8000, scoped, tag = 'input window, operand 1, single buffered']
    #allocation6 [shape = 's32[1]{0}', space=sflag, size = 0x4, scoped, tag = 'scoped memory for tpu_custom_call.1']
    #allocation7 [shape = 'u8[32768]{0}', space=vmem, size = 0x8000, scoped, tag = 'input window, operand 2, single buffered']
    #allocation8 [shape = 'u8[32768]{0}', space=vmem, size = 0x8000, scoped, tag = 'input window, operand 3, single buffered']
    #allocation9 [shape = 's32[1]{0}', space=sflag, size = 0x4, scoped, tag = 'scoped memory for tpu_custom_call.1']
    #allocation10 [shape = 'u8[2048]{0}', space=vmem, size = 0x800, scoped, tag = 'input window, operand 4, single buffered']
    #allocation11 [shape = 'u8[8192]{0}', space=vmem, size = 0x2000, scoped, tag = 'output window, operand 0']
    %10 = vsyncpa [#allocation3], 0
    %s11 = scalar_lea.sflag [#allocation3], 1
    %12 = vsyncpa %s11, 0
    %13 = vsyncpa [#allocation6], 0
    %14 = vsyncpa [#allocation9], 0
    %15 = vsyncpa [#allocation4], 0
    %s16 = scalar_lea.sflag [#allocation4], 1
    %17 = vsyncpa %s16, 0
    loop: start=0, step=1, limit=5
    $region2: #{tpu_custom_call.1} parent=1 // loop_pre_header
      _
    $region3: #{tpu_custom_call.1} parent=1 // loop_header
      %s19 = sphi 0, %s23
      %p20 = scmp.ge.s32.totalorder %s19, 5
      %s29 = sphi 0, %s31
      %s32 = sphi 0, %s29
      %s33 = sphi 0, %s32
      %s49 = sphi 0, %s33
      %s53 = sphi 0, %s53
      %s55 = sphi 0, %s53
      %s56 = sphi 0, %s55
      %s70 = sphi 0, %s56
      %s74 = sphi 0, %s74
      %s76 = sphi 0, %s74
      %s77 = sphi 0, %s76
      %s91 = sphi 0, %s77
      %s95 = sphi 0, %s95
      %s97 = sphi 0, %s95
      %s98 = sphi 0, %s97
      %s112 = sphi 0, %s98
      %s116 = sphi 0, %s116
      %s118 = sphi 0, %s116
      %s119 = sphi 0, %s118
      %s133 = sphi 0, %s119
      %s139 = sphi 0, %s141
      %s142 = sphi 0, %s139
      %s143 = sphi 0, %s142
      %s159 = sphi 0, %s143
    $region4: #{tpu_custom_call.1} parent=1 // loop_header_branch
      %22 = sbr.rel (%p20) target = $region8
    $region5: #{tpu_custom_call.1} parent=1 // loop_body
      %s24 = ssub.s32 %s19, 1
      %s25 = ssub.s32 %s19, 2
      %s26 = sadd.s32 %s19, 1
      %s27 = ssub.s32 %s19, %s26
      %p28 = scmp.eq.s32.totalorder %s27, 0
      %s30 = sadd.s32 %s29, 1
      %s31 = scalar_select %p28, %s29, %s30
      %p34 = pneg %p28
      %p35 = scmp.eq.s32.totalorder %s19, 2
      %p36 = por %p34, %p35
      %p37 = scmp.ne.s32.totalorder %s29, %s32
      %p38 = scmp.eq.s32.totalorder %s19, 0
      %p39 = por %p37, %p38
      %p40 = scmp.ne.s32.totalorder %s29, %s32
      %p41 = scmp.eq.s32.totalorder %s24, 2
      %p42 = por %p40, %p41
      %p43 = scmp.ne.s32.totalorder %s32, %s33
      %p44 = scmp.eq.s32.totalorder %s24, 0
      %p45 = por %p43, %p44
      %p46 = scmp.ne.s32.totalorder %s32, %s33
      %p47 = scmp.eq.s32.totalorder %s25, 2
      %p48 = por %p46, %p47
      %p50 = scmp.ne.s32.totalorder %s33, %s49
      %p51 = scmp.eq.s32.totalorder %s25, 0
      %p52 = por %p50, %p51
      %s54 = sadd.s32 %s53, 1
      %p57 = scmp.eq.s32.totalorder %s19, 2
      %p58 = scmp.ne.s32.totalorder %s53, %s55
      %p59 = scmp.eq.s32.totalorder %s19, 0
      %p60 = por %p58, %p59
      %p61 = scmp.ne.s32.totalorder %s53, %s55
      %p62 = scmp.eq.s32.totalorder %s24, 2
      %p63 = por %p61, %p62
      %p64 = scmp.ne.s32.totalorder %s55, %s56
      %p65 = scmp.eq.s32.totalorder %s24, 0
      %p66 = por %p64, %p65
      %p67 = scmp.ne.s32.totalorder %s55, %s56
      %p68 = scmp.eq.s32.totalorder %s25, 2
      %p69 = por %p67, %p68
      %p71 = scmp.ne.s32.totalorder %s56, %s70
      %p72 = scmp.eq.s32.totalorder %s25, 0
      %p73 = por %p71, %p72
      %s75 = sadd.s32 %s74, 1
      %p78 = scmp.eq.s32.totalorder %s19, 2
      %p79 = scmp.ne.s32.totalorder %s74, %s76
      %p80 = scmp.eq.s32.totalorder %s19, 0
      %p81 = por %p79, %p80
      %p82 = scmp.ne.s32.totalorder %s74, %s76
      %p83 = scmp.eq.s32.totalorder %s24, 2
      %p84 = por %p82, %p83
      %p85 = scmp.ne.s32.totalorder %s76, %s77
      %p86 = scmp.eq.s32.totalorder %s24, 0
      %p87 = por %p85, %p86
      %p88 = scmp.ne.s32.totalorder %s76, %s77
      %p89 = scmp.eq.s32.totalorder %s25, 2
      %p90 = por %p88, %p89
      %p92 = scmp.ne.s32.totalorder %s77, %s91
      %p93 = scmp.eq.s32.totalorder %s25, 0
      %p94 = por %p92, %p93
      %s96 = sadd.s32 %s95, 1
      %p99 = scmp.eq.s32.totalorder %s19, 2
      %p100 = scmp.ne.s32.totalorder %s95, %s97
      %p101 = scmp.eq.s32.totalorder %s19, 0
      %p102 = por %p100, %p101
      %p103 = scmp.ne.s32.totalorder %s95, %s97
      %p104 = scmp.eq.s32.totalorder %s24, 2
      %p105 = por %p103, %p104
      %p106 = scmp.ne.s32.totalorder %s97, %s98
      %p107 = scmp.eq.s32.totalorder %s24, 0
      %p108 = por %p106, %p107
      %p109 = scmp.ne.s32.totalorder %s97, %s98
      %p110 = scmp.eq.s32.totalorder %s25, 2
      %p111 = por %p109, %p110
      %p113 = scmp.ne.s32.totalorder %s98, %s112
      %p114 = scmp.eq.s32.totalorder %s25, 0
      %p115 = por %p113, %p114
      %s117 = sadd.s32 %s116, 1
      %p120 = scmp.eq.s32.totalorder %s19, 2
      %p121 = scmp.ne.s32.totalorder %s116, %s118
      %p122 = scmp.eq.s32.totalorder %s19, 0
      %p123 = por %p121, %p122
      %p124 = scmp.ne.s32.totalorder %s116, %s118
      %p125 = scmp.eq.s32.totalorder %s24, 2
      %p126 = por %p124, %p125
      %p127 = scmp.ne.s32.totalorder %s118, %s119
      %p128 = scmp.eq.s32.totalorder %s24, 0
      %p129 = por %p127, %p128
      %p130 = scmp.ne.s32.totalorder %s118, %s119
      %p131 = scmp.eq.s32.totalorder %s25, 2
      %p132 = por %p130, %p131
      %p134 = scmp.ne.s32.totalorder %s119, %s133
      %p135 = scmp.eq.s32.totalorder %s25, 0
      %p136 = por %p134, %p135
      %s137 = ssub.s32 %s19, %s26
      %p138 = scmp.eq.s32.totalorder %s137, 0
      %s140 = sadd.s32 %s139, 1
      %s141 = scalar_select %p138, %s139, %s140
      %p144 = pneg %p138
      %p145 = scmp.eq.s32.totalorder %s19, 2
      %p146 = por %p144, %p145
      %p147 = scmp.ne.s32.totalorder %s139, %s142
      %p148 = scmp.eq.s32.totalorder %s19, 0
      %p149 = por %p147, %p148
      %p150 = scmp.ne.s32.totalorder %s139, %s142
      %p151 = scmp.eq.s32.totalorder %s24, 2
      %p152 = por %p150, %p151
      %p153 = scmp.ne.s32.totalorder %s142, %s143
      %p154 = scmp.eq.s32.totalorder %s24, 0
      %p155 = por %p153, %p154
      %p156 = scmp.ne.s32.totalorder %s142, %s143
      %p157 = scmp.eq.s32.totalorder %s25, 2
      %p158 = por %p156, %p157
      %p160 = scmp.ne.s32.totalorder %s143, %s159
      %p161 = scmp.eq.s32.totalorder %s25, 0
      %p162 = por %p160, %p161
      %p163 = scmp.le.s32.totalorder 1, %s19
      %p164 = scmp.lt.s32.totalorder %s19, 4
      %p165 = pnand %p163, %p164
      %p166 = pneg %p165
      // Predicated region
      $region9: #{tpu_custom_call.1} parent=5 // pred_check
        _
      $region10: #{tpu_custom_call.1} parent=5 // pred_check_branch
        %168 = sbr.rel (%p165) target = $region12
      $region11: #{tpu_custom_call.1} parent=5 // pred_region
        %s169 = ssub.s32 %s19, 1
        // Predicated region
        $region13: #{tpu_custom_call.1} parent=11 // pred_check
          %p170 = pneg %p66
        $region14: #{tpu_custom_call.1} parent=11 // pred_check_branch
          %172 = sbr.rel (%p170) target = $region16
        $region15: #{tpu_custom_call.1} parent=11 // pred_region
          %174 = vsyncadd [#allocation6], 0
          %s175 = sshll.u32 %s1, 4
          %s176 = int_to_ptr.hbm [resolvable:$true] %s175
          %s177 = sshll.u32 [#allocation5], 4
          %s178 = int_to_ptr.vmem [resolvable:$true] %s177
          %183 = dma.hbm_to_vmem [thread:$0]  %s176, 1024, %s178, [#allocation6], 64, 64, 4
        $region16: #{tpu_custom_call.1} parent=11 // pred_fallthru
          _
        // Predicated region
        $region17: #{tpu_custom_call.1} parent=11 // pred_check
          %p184 = pneg %p87
        $region18: #{tpu_custom_call.1} parent=11 // pred_check_branch
          %186 = sbr.rel (%p184) target = $region20
        $region19: #{tpu_custom_call.1} parent=11 // pred_region
          %188 = vsyncadd [#allocation6], 0
          %s189 = sshll.u32 %s2, 4
          %s190 = int_to_ptr.hbm [resolvable:$true] %s189
          %s191 = sshll.u32 [#allocation7], 4
          %s192 = int_to_ptr.vmem [resolvable:$true] %s191
          %197 = dma.hbm_to_vmem [thread:$0]  %s190, 1024, %s192, [#allocation6], 64, 64, 4
        $region20: #{tpu_custom_call.1} parent=11 // pred_fallthru
          _
        // Predicated region
        $region21: #{tpu_custom_call.1} parent=11 // pred_check
          %p198 = pneg %p108
        $region22: #{tpu_custom_call.1} parent=11 // pred_check_branch
          %200 = sbr.rel (%p198) target = $region24
        $region23: #{tpu_custom_call.1} parent=11 // pred_region
          %202 = vsyncadd [#allocation9], 0
          %s203 = sshll.u32 %s3, 4
          %s204 = int_to_ptr.hbm [resolvable:$true] %s203
          %s205 = sshll.u32 [#allocation8], 4
          %s206 = int_to_ptr.vmem [resolvable:$true] %s205
          %211 = dma.hbm_to_vmem [thread:$0]  %s204, 1024, %s206, [#allocation9], 64, 64, 4
        $region24: #{tpu_custom_call.1} parent=11 // pred_fallthru
          _
        // Predicated region
        $region25: #{tpu_custom_call.1} parent=11 // pred_check
          %p212 = pneg %p129
        $region26: #{tpu_custom_call.1} parent=11 // pred_check_branch
          %214 = sbr.rel (%p212) target = $region28
        $region27: #{tpu_custom_call.1} parent=11 // pred_region
          %216 = vsyncadd [#allocation9], 0
          %s218 = sshll.u32 %s4, 4
          %s219 = int_to_ptr.hbm [resolvable:$true] %s218
          %s220 = sshll.u32 [#allocation10], 4
          %s221 = int_to_ptr.vmem [resolvable:$true] %s220
          %223 = dma.hbm_to_vmem [thread:$0]  %s219, 64, %s221, [#allocation9]
        $region28: #{tpu_custom_call.1} parent=11 // pred_fallthru
          _
      $region12: #{tpu_custom_call.1} parent=5 // pred_fallthru
        _
      %p224 = scmp.lt.s32.totalorder %s19, 3
      // Predicated region
      $region29: #{tpu_custom_call.1} parent=5 // pred_check
        %p225 = pneg %p224
      $region30: #{tpu_custom_call.1} parent=5 // pred_check_branch
        %227 = sbr.rel (%p225) target = $region32
      $region31: #{tpu_custom_call.1} parent=5 // pred_region
        // Predicated region
        $region33: #{tpu_custom_call.1} parent=31 // pred_check
          %p228 = pneg %p39
        $region34: #{tpu_custom_call.1} parent=31 // pred_check_branch
          %230 = sbr.rel (%p228) target = $region36
        $region35: #{tpu_custom_call.1} parent=31 // pred_region
          %s231 = sand.u32 %s29, 1
          %s232 = scalar_lea.sflag [#allocation3], %s231
          %s233 = sand.u32 %s29, 1
          %s234 = smul.addr %s233, 4
          %s235 = scalar_lea.vmem [#allocation2], %s234
          %237 = vsyncadd %s232, 0
          %s238 = smul.addr %s19, 4
          %s239 = scalar_lea.hbm %s0, %s238
          %s241 = sshll.u32 %s239, 4
          %s242 = int_to_ptr.hbm [resolvable:$true] %s241
          %s243 = sshll.u32 %s235, 4
          %s244 = int_to_ptr.vmem [resolvable:$true] %s243
          %246 = dma.hbm_to_vmem [thread:$0]  %s242, 64, %s244, %s232
        $region36: #{tpu_custom_call.1} parent=31 // pred_fallthru
          _
      $region32: #{tpu_custom_call.1} parent=5 // pred_fallthru
        _
      %p247 = scmp.le.s32.totalorder 1, %s19
      %p248 = scmp.lt.s32.totalorder %s19, 4
      %p249 = pnand %p247, %p248
      %p250 = pneg %p249
      // Predicated region
      $region37: #{tpu_custom_call.1} parent=5 // pred_check
        _
      $region38: #{tpu_custom_call.1} parent=5 // pred_check_branch
        %252 = sbr.rel (%p249) target = $region40
      $region39: #{tpu_custom_call.1} parent=5 // pred_region
        %s253 = ssub.s32 %s19, 1
        %s254 = sand.u32 %s32, 1
        %s255 = scalar_lea.sflag [#allocation3], %s254
        %s256 = sand.u32 %s32, 1
        %s257 = smul.addr %s256, 4
        %s258 = scalar_lea.vmem [#allocation2], %s257
        // Predicated region
        $region41: #{tpu_custom_call.1} parent=39 // pred_check
          %p259 = pneg %p45
        $region42: #{tpu_custom_call.1} parent=39 // pred_check_branch
          %261 = sbr.rel (%p259) target = $region44
        $region43: #{tpu_custom_call.1} parent=39 // pred_region
          %263 = dma.done %s255, 64
        $region44: #{tpu_custom_call.1} parent=39 // pred_fallthru
          _
        // Predicated region
        $region45: #{tpu_custom_call.1} parent=39 // pred_check
          %p264 = pneg %p66
        $region46: #{tpu_custom_call.1} parent=39 // pred_check_branch
          %266 = sbr.rel (%p264) target = $region48
        $region47: #{tpu_custom_call.1} parent=39 // pred_region
          %268 = dma.done [#allocation6], 1024
        $region48: #{tpu_custom_call.1} parent=39 // pred_fallthru
          _
        // Predicated region
        $region49: #{tpu_custom_call.1} parent=39 // pred_check
          %p269 = pneg %p87
        $region50: #{tpu_custom_call.1} parent=39 // pred_check_branch
          %271 = sbr.rel (%p269) target = $region52
        $region51: #{tpu_custom_call.1} parent=39 // pred_region
          %273 = dma.done [#allocation6], 1024
        $region52: #{tpu_custom_call.1} parent=39 // pred_fallthru
          _
        // Predicated region
        $region53: #{tpu_custom_call.1} parent=39 // pred_check
          %p274 = pneg %p108
        $region54: #{tpu_custom_call.1} parent=39 // pred_check_branch
          %276 = sbr.rel (%p274) target = $region56
        $region55: #{tpu_custom_call.1} parent=39 // pred_region
          %278 = dma.done [#allocation9], 1024
        $region56: #{tpu_custom_call.1} parent=39 // pred_fallthru
          _
        // Predicated region
        $region57: #{tpu_custom_call.1} parent=39 // pred_check
          %p279 = pneg %p129
        $region58: #{tpu_custom_call.1} parent=39 // pred_check_branch
          %281 = sbr.rel (%p279) target = $region60
        $region59: #{tpu_custom_call.1} parent=39 // pred_region
          %283 = dma.done [#allocation9], 64
        $region60: #{tpu_custom_call.1} parent=39 // pred_fallthru
          _
        %s284 = sand.u32 %s32, 1
        %s285 = scalar_lea.sflag [#allocation3], %s284
        %s286 = sand.u32 %s32, 1
        %s287 = smul.addr %s286, 4
        %s288 = scalar_lea.vmem [#allocation2], %s287
        %p289 = pneg %p45
        %p290 = pneg %p42
        %p291 = pneg %p66
        %p292 = pneg %p63
        %p293 = pneg %p87
        %p294 = pneg %p84
        %p295 = pneg %p108
        %p296 = pneg %p105
        %p297 = pneg %p129
        %p298 = pneg %p126
        %p299 = pneg %p155
        %p300 = pneg %p152
        %s301 = sand.u32 %s142, 1
        %s302 = scalar_lea.sflag [#allocation4], %s301
        %s303 = sand.u32 %s142, 1
        %s304 = smul.addr %s303, 8
        %s305 = scalar_lea.vmem [#allocation11], %s304
        %v306 = vld [vmem:[#allocation10] sm:$0x7]
        %v307 = vld [vmem:[%s258] sm:$0xf]
        %v308 = vld [vmem:[#allocation5] sm:$0xf]
        %v309 = vld [vmem:[#allocation5 + $0x4] sm:$0xf]
        %v310 = vld [vmem:[#allocation5 + $0x8] sm:$0xf]
        %v311 = vld [vmem:[#allocation5 + $0xc] sm:$0xf]
        %v312 = vld [vmem:[#allocation5 + $0x10] sm:$0xf]
        %v313 = vld [vmem:[#allocation5 + $0x14] sm:$0xf]
        %v314 = vld [vmem:[#allocation5 + $0x18] sm:$0xf]
        %v315 = vld [vmem:[#allocation5 + $0x1c] sm:$0xf]
        %v316 = vld [vmem:[#allocation5 + $0x20] sm:$0xf]
        %v317 = vld [vmem:[#allocation5 + $0x24] sm:$0xf]
        %v318 = vld [vmem:[#allocation5 + $0x28] sm:$0xf]
        %v319 = vld [vmem:[#allocation5 + $0x2c] sm:$0xf]
        %v320 = vld [vmem:[#allocation5 + $0x30] sm:$0xf]
        %v321 = vld [vmem:[#allocation5 + $0x34] sm:$0xf]
        %v322 = vld [vmem:[#allocation5 + $0x38] sm:$0xf]
        %v323 = vld [vmem:[#allocation5 + $0x3c] sm:$0xf]
        %v324 = vperm.slane %v306, 0
        %v341 = vunpack.c.l.b16 %v308
        %v342 = vunpack.c.l.b16 %v309
        %v343 = vunpack.c.l.b16 %v310
        %v344 = vunpack.c.l.b16 %v311
        %v345 = vunpack.c.l.b16 %v312
        %v346 = vunpack.c.l.b16 %v313
        %v347 = vunpack.c.l.b16 %v314
        %v348 = vunpack.c.l.b16 %v315
        %v349 = vunpack.c.l.b16 %v316
        %v350 = vunpack.c.l.b16 %v317
        %v351 = vunpack.c.l.b16 %v318
        %v352 = vunpack.c.l.b16 %v319
        %v353 = vunpack.c.l.b16 %v320
        %v354 = vunpack.c.l.b16 %v321
        %v355 = vunpack.c.l.b16 %v322
        %v356 = vunpack.c.l.b16 %v323
        %v357 = vpack.c.b16 %v342, %v341
        %v358 = vpack.c.b16 %v344, %v343
        %v359 = vpack.c.b16 %v346, %v345
        %v360 = vpack.c.b16 %v348, %v347
        %v361 = vpack.c.b16 %v350, %v349
        %v362 = vpack.c.b16 %v352, %v351
        %v363 = vpack.c.b16 %v354, %v353
        %v364 = vpack.c.b16 %v356, %v355
        %373 = vmatpush.bf16.msra.mxu0 %v364
        %374 = vmatpush.bf16.msra.mxu0 %v363
        %375 = vmatpush.bf16.msra.mxu0 %v362
        %376 = vmatpush.bf16.msra.mxu0 %v361
        %377 = vmatpush.bf16.msra.mxu0 %v360
        %378 = vmatpush.bf16.msra.mxu0 %v359
        %379 = vmatpush.bf16.msra.mxu0 %v358
        %380 = vmatpush.bf16.msra.mxu0 %v357
        %381 = vmatmul.bf16.gmra.mxu0 %v307
        %v382 = vpop.f32.mrf.mxu0
        %v383 = vadd.f32 %v324, %v382
        %v384 = vpop.f32.mrf.mxu0
        %385 = vdwg.mxu0
        %v386 = vmax.f32 %v383, 0.0
        %v387 = vpack.c.bf16 %v386, %v386
        %v388 = vld [vmem:[#allocation7] sm:$0xf]
        %v389 = vld [vmem:[#allocation7 + $0x4] sm:$0xf]
        %v390 = vld [vmem:[#allocation7 + $0x8] sm:$0xf]
        %v391 = vld [vmem:[#allocation7 + $0xc] sm:$0xf]
        %v392 = vld [vmem:[#allocation7 + $0x10] sm:$0xf]
        %v393 = vld [vmem:[#allocation7 + $0x14] sm:$0xf]
        %v394 = vld [vmem:[#allocation7 + $0x18] sm:$0xf]
        %v395 = vld [vmem:[#allocation7 + $0x1c] sm:$0xf]
        %v396 = vld [vmem:[#allocation7 + $0x20] sm:$0xf]
        %v397 = vld [vmem:[#allocation7 + $0x24] sm:$0xf]
        %v398 = vld [vmem:[#allocation7 + $0x28] sm:$0xf]
        %v399 = vld [vmem:[#allocation7 + $0x2c] sm:$0xf]
        %v400 = vld [vmem:[#allocation7 + $0x30] sm:$0xf]
        %v401 = vld [vmem:[#allocation7 + $0x34] sm:$0xf]
        %v402 = vld [vmem:[#allocation7 + $0x38] sm:$0xf]
        %v403 = vld [vmem:[#allocation7 + $0x3c] sm:$0xf]
        %v404 = vperm.slane %v306, 1
        %v421 = vunpack.c.l.b16 %v388
        %v422 = vunpack.c.l.b16 %v389
        %v423 = vunpack.c.l.b16 %v390
        %v424 = vunpack.c.l.b16 %v391
        %v425 = vunpack.c.l.b16 %v392
        %v426 = vunpack.c.l.b16 %v393
        %v427 = vunpack.c.l.b16 %v394
        %v428 = vunpack.c.l.b16 %v395
        %v429 = vunpack.c.l.b16 %v396
        %v430 = vunpack.c.l.b16 %v397
        %v431 = vunpack.c.l.b16 %v398
        %v432 = vunpack.c.l.b16 %v399
        %v433 = vunpack.c.l.b16 %v400
        %v434 = vunpack.c.l.b16 %v401
        %v435 = vunpack.c.l.b16 %v402
        %v436 = vunpack.c.l.b16 %v403
        %v437 = vpack.c.b16 %v422, %v421
        %v438 = vpack.c.b16 %v424, %v423
        %v439 = vpack.c.b16 %v426, %v425
        %v440 = vpack.c.b16 %v428, %v427
        %v441 = vpack.c.b16 %v430, %v429
        %v442 = vpack.c.b16 %v432, %v431
        %v443 = vpack.c.b16 %v434, %v433
        %v444 = vpack.c.b16 %v436, %v435
        %453 = vmatpush.bf16.msra.mxu0 %v444
        %454 = vmatpush.bf16.msra.mxu0 %v443
        %455 = vmatpush.bf16.msra.mxu0 %v442
        %456 = vmatpush.bf16.msra.mxu0 %v441
        %457 = vmatpush.bf16.msra.mxu0 %v440
        %458 = vmatpush.bf16.msra.mxu0 %v439
        %459 = vmatpush.bf16.msra.mxu0 %v438
        %460 = vmatpush.bf16.msra.mxu0 %v437
        %461 = vmatmul.bf16.gmra.mxu0 %v387
        %v462 = vpop.f32.mrf.mxu0
        %v463 = vadd.f32 %v404, %v462
        %v464 = vpop.f32.mrf.mxu0
        %465 = vdwg.mxu0
        %v466 = vmax.f32 %v463, 0.0
        %v467 = vpack.c.bf16 %v466, %v466
        %v468 = vld [vmem:[#allocation8] sm:$0xf]
        %v469 = vld [vmem:[#allocation8 + $0x4] sm:$0xf]
        %v470 = vld [vmem:[#allocation8 + $0x8] sm:$0xf]
        %v471 = vld [vmem:[#allocation8 + $0xc] sm:$0xf]
        %v472 = vld [vmem:[#allocation8 + $0x10] sm:$0xf]
        %v473 = vld [vmem:[#allocation8 + $0x14] sm:$0xf]
        %v474 = vld [vmem:[#allocation8 + $0x18] sm:$0xf]
        %v475 = vld [vmem:[#allocation8 + $0x1c] sm:$0xf]
        %v476 = vld [vmem:[#allocation8 + $0x20] sm:$0xf]
        %v477 = vld [vmem:[#allocation8 + $0x24] sm:$0xf]
        %v478 = vld [vmem:[#allocation8 + $0x28] sm:$0xf]
        %v479 = vld [vmem:[#allocation8 + $0x2c] sm:$0xf]
        %v480 = vld [vmem:[#allocation8 + $0x30] sm:$0xf]
        %v481 = vld [vmem:[#allocation8 + $0x34] sm:$0xf]
        %v482 = vld [vmem:[#allocation8 + $0x38] sm:$0xf]
        %v483 = vld [vmem:[#allocation8 + $0x3c] sm:$0xf]
        %v484 = vperm.slane %v306, 2
        %v501 = vunpack.c.l.b16 %v468
        %v502 = vunpack.c.l.b16 %v469
        %v503 = vunpack.c.l.b16 %v470
        %v504 = vunpack.c.l.b16 %v471
        %v505 = vunpack.c.l.b16 %v472
        %v506 = vunpack.c.l.b16 %v473
        %v507 = vunpack.c.l.b16 %v474
        %v508 = vunpack.c.l.b16 %v475
        %v509 = vunpack.c.l.b16 %v476
        %v510 = vunpack.c.l.b16 %v477
        %v511 = vunpack.c.l.b16 %v478
        %v512 = vunpack.c.l.b16 %v479
        %v513 = vunpack.c.l.b16 %v480
        %v514 = vunpack.c.l.b16 %v481
        %v515 = vunpack.c.l.b16 %v482
        %v516 = vunpack.c.l.b16 %v483
        %v517 = vpack.c.b16 %v502, %v501
        %v518 = vpack.c.b16 %v504, %v503
        %v519 = vpack.c.b16 %v506, %v505
        %v520 = vpack.c.b16 %v508, %v507
        %v521 = vpack.c.b16 %v510, %v509
        %v522 = vpack.c.b16 %v512, %v511
        %v523 = vpack.c.b16 %v514, %v513
        %v524 = vpack.c.b16 %v516, %v515
        %533 = vmatpush.bf16.msra.mxu0 %v524
        %534 = vmatpush.bf16.msra.mxu0 %v523
        %535 = vmatpush.bf16.msra.mxu0 %v522
        %536 = vmatpush.bf16.msra.mxu0 %v521
        %537 = vmatpush.bf16.msra.mxu0 %v520
        %538 = vmatpush.bf16.msra.mxu0 %v519
        %539 = vmatpush.bf16.msra.mxu0 %v518
        %540 = vmatpush.bf16.msra.mxu0 %v517
        %541 = vmatmul.bf16.gmra.mxu0 %v467
        %v542 = vpop.f32.mrf.mxu0
        %v543 = vadd.f32 %v484, %v542
        %v544 = vpop.f32.mrf.mxu0
        %545 = vdwg.mxu0
        %546 = vst [vmem:[%s305] sm:$0xff] %v543
        %s547 = sand.u32 %s142, 1
        %s548 = scalar_lea.sflag [#allocation4], %s547
        %s549 = sand.u32 %s142, 1
        %s550 = smul.addr %s549, 8
        %s551 = scalar_lea.vmem [#allocation11], %s550
        // Predicated region
        $region61: #{tpu_custom_call.1} parent=39 // pred_check
          %p552 = pneg %p152
        $region62: #{tpu_custom_call.1} parent=39 // pred_check_branch
          %554 = sbr.rel (%p552) target = $region64
        $region63: #{tpu_custom_call.1} parent=39 // pred_region
          %556 = vsyncadd %s548, 0
          %s557 = smul.addr %s24, 8
          %s558 = scalar_lea.hbm %s5, %s557
          %s560 = sshll.u32 %s551, 4
          %s561 = int_to_ptr.vmem [resolvable:$true] %s560
          %s562 = sshll.u32 %s558, 4
          %s563 = int_to_ptr.hbm [resolvable:$true] %s562
          %565 = dma.vmem_to_hbm [thread:$0]  %s561, 128, %s563, %s548
        $region64: #{tpu_custom_call.1} parent=39 // pred_fallthru
          _
      $region40: #{tpu_custom_call.1} parent=5 // pred_fallthru
        _
      %p566 = scmp.le.s32.totalorder 2, %s19
      // Predicated region
      $region65: #{tpu_custom_call.1} parent=5 // pred_check
        %p567 = pneg %p566
      $region66: #{tpu_custom_call.1} parent=5 // pred_check_branch
        %569 = sbr.rel (%p567) target = $region68
      $region67: #{tpu_custom_call.1} parent=5 // pred_region
        %s570 = ssub.s32 %s19, 2
        // Predicated region
        $region69: #{tpu_custom_call.1} parent=67 // pred_check
          %p571 = pneg %p158
        $region70: #{tpu_custom_call.1} parent=67 // pred_check_branch
          %573 = sbr.rel (%p571) target = $region72
        $region71: #{tpu_custom_call.1} parent=67 // pred_region
          %s574 = sand.u32 %s143, 1
          %s575 = scalar_lea.sflag [#allocation4], %s574
          %s576 = sand.u32 %s143, 1
          %s577 = smul.addr %s576, 8
          %s578 = scalar_lea.vmem [#allocation11], %s577
          %580 = dma.done %s575, 128
        $region72: #{tpu_custom_call.1} parent=67 // pred_fallthru
          _
      $region68: #{tpu_custom_call.1} parent=5 // pred_fallthru
        _
    $region6: #{tpu_custom_call.1} parent=1 // loop_footer
      %s23 = sadd.s32 1, %s19
    $region7: #{tpu_custom_call.1} parent=1 // loop_footer_branch
      %18 = sbr.rel target = $region3
    $region8: #{tpu_custom_call.1} parent=1 // loop_exit
      _
    %581 = vsyncpa [#allocation3], 1
    %s582 = scalar_lea.sflag [#allocation3], 1
    %583 = vsyncpa %s582, 1
    %584 = vsyncpa [#allocation6], 1
    %585 = vsyncpa [#allocation9], 1
    %586 = vsyncpa [#allocation4], 1
    %s587 = scalar_lea.sflag [#allocation4], 1
    %588 = vsyncpa %s587, 1

</llo_original>
